<compile_context>
chip_gen: v7x
topology: tpu7x:2x2x1
jax: 0.10.0
libtpu: 0.0.40
codegen_flags: <defaults>
</compile_context>

<pallas_src>
import functools

import jax
import jax.numpy as jnp
from jax.experimental import pallas as pl
from jax.experimental.pallas import tpu as pltpu


def _round_up(x, m):
    return ((x + m - 1) // m) * m


def _pick_block_e(E, D, input_budget_bytes=8 << 20):
    """Lane-axis tile size: multiple of 128, budget-scaled, >=2 grid steps."""
    e128 = _round_up(E, 128)
    # Double-buffered operand footprint per step: 2 inputs x 2 bufs x D x 4 B.
    cap = max(128, (input_budget_bytes // (16 * D)) // 128 * 128)
    block_e = min(cap, e128)
    # v7x megacore: keep >= 2 grid steps when possible so the "parallel" axis
    # can shard across both TensorCores; costs at most one extra (~0.35 us)
    # step on single-TC chips (v5e/v6e), which is negligible.
    if e128 >= 256:
        block_e = min(block_e, _round_up(pl.cdiv(e128, 2), 128))
    return max(128, block_e)


def _fermi_dirac_kernel(sc_ref, xs_ref, xd_ref, o_ref, *, inv_radius_sq):
    # xs_ref / xd_ref: (D, TE) tiles of gathered edge endpoints (edges on
    # lanes). The Minkowski sign is already folded into xs (time row negated).
    x = xs_ref[...].astype(jnp.float32)
    y = xd_ref[...].astype(jnp.float32)

    inner = jnp.sum(x * y, axis=0, keepdims=True)            # <x,y>_L, (1, TE)

    # arccosh(1 + s), s = -<x,y>_L / R^2 - 1 clamped to >= 0 (exact at d == 0).
    s = jnp.maximum(-inner * inv_radius_sq - 1.0, 0.0)
    u = s + jnp.sqrt(s * (s + 2.0))                          # u >= 0
    w = 1.0 + u
    # log1p(u) via Kahan's compensated form: cancellation-safe near u == 0 and
    # built only from ops with guaranteed Mosaic lowering (log, div, where).
    core = jnp.where(w == 1.0, u,
                     jnp.log(w) * (u / jnp.maximum(w - 1.0, 1e-30)))

    bias = sc_ref[0]      # r / t
    scale = sc_ref[1]     # radius / t
    # probs = 1 / (exp((dist - r)/t) + 1)  with dist = radius * core.
    o_ref[...] = 1.0 / (jnp.exp(scale * core - bias) + 1.0)   # (1, TE)


def fermi_dirac_decoder(z, edge_index, radius, r, t, input_budget_bytes=8 << 20):
    """Pallas implementation of FermiDiracDecoder.forward."""
    radius = float(radius)
    E = int(edge_index.shape[1])
    if E == 0:
        return jnp.zeros((0,), jnp.float32)
    D = int(z.shape[1])

    block_e = _pick_block_e(E, D, input_budget_bytes)
    E_pad = _round_up(E, block_e)

    # Pad the *indices* (with 0 -> harmless self-edges sliced off at the end).
    idx = jnp.asarray(edge_index, jnp.int32)
    pad = E_pad - E
    src_idx = jnp.pad(idx[0], (0, pad))
    dst_idx = jnp.pad(idx[1], (0, pad))

    # Tiny (D, N) precomputes. Fold the Minkowski -1 into the time row of the
    # SOURCE copy only, so the kernel computes a plain elementwise-product sum.
    zT = jnp.asarray(z).T                                     # (D, N)
    sgn = jnp.concatenate([jnp.full((1, 1), -1, zT.dtype),
                           jnp.ones((D - 1, 1), zT.dtype)], axis=0)
    zT_src = zT * sgn

    # Lane-axis gathers produce (D, E_pad) directly -- no big relayout, and no
    # up-cast here (the kernel casts to f32 right after load).
    src = jnp.take(zT_src, src_idx, axis=1)
    dst = jnp.take(zT, dst_idx, axis=1)

    # Pre-folded scalars in SMEM: bias = r/t, scale = radius/t.
    r_f = jnp.asarray(r, jnp.float32)
    inv_t = 1.0 / jnp.asarray(t, jnp.float32)
    scalars = jnp.stack([r_f * inv_t, radius * inv_t]).astype(jnp.float32)

    grid = (E_pad // block_e,)
    kernel = functools.partial(_fermi_dirac_kernel,
                               inv_radius_sq=1.0 / (radius * radius))

    # VMEM footprint: 2 ops x 2 bufs x D x block_e x 4 B (<= ~8 MiB) plus the
    # double-buffered (1, block_e) output (<= 0.5 MiB) -- fits v7x's 64 MiB
    # comfortably, so a 32 MiB scoped limit is plenty on all generations.
    out = pl.pallas_call(
        kernel,
        out_shape=jax.ShapeDtypeStruct((1, E_pad), jnp.float32),
        grid=grid,
        in_specs=[
            pl.BlockSpec(memory_space=pltpu.MemorySpace.SMEM),   # (bias, scale)
            pl.BlockSpec((D, block_e), lambda i: (0, i)),        # src (D, TE)
            pl.BlockSpec((D, block_e), lambda i: (0, i)),        # dst (D, TE)
        ],
        out_specs=pl.BlockSpec((1, block_e), lambda i: (0, i)),  # lane-dense
        compiler_params=pltpu.CompilerParams(
            dimension_semantics=("parallel",),
            vmem_limit_bytes=32 * 1024 * 1024),
    )(scalars, src, dst)
    return out[0, :E]  # == probs.squeeze()


def _reference(z, edge_index, radius, r, t):
    x = z[edge_index[0]].astype(jnp.float32)
    y = z[edge_index[1]].astype(jnp.float32)
    inner = -x[:, 0] * y[:, 0] + jnp.sum(x[:, 1:] * y[:, 1:], axis=-1)
    arg = jnp.maximum(-inner / (radius * radius), 1.0)
    dist = radius * jnp.arccosh(arg)
    return 1.0 / (jnp.exp((dist - r) / t) + 1.0)


if __name__ == "__main__":
    key = jax.random.PRNGKey(0)
    k1, k2, k3 = jax.random.split(key, 3)

    # Deterministic "module parameters" (FermiDiracDecoder(radius, r, t)).
    radius = 1.0
    r = jnp.float32(2.0)
    t = jnp.float32(1.0)

    # Small inputs: N=16 nodes on the hyperboloid, ambient dim D=8, E=20 edges.
    N, D_spatial, E = 16, 7, 20
    xs = 0.5 * jax.random.normal(k1, (N, D_spatial), jnp.float32)
    x0 = jnp.sqrt(radius * radius + jnp.sum(xs * xs, axis=-1, keepdims=True))
    z = jnp.concatenate([x0, xs], axis=-1)                        # (16, 8)

    # Random edges without self-loops (self-loops sit at the acosh singularity,
    # where any f32 rounding difference is amplified arbitrarily).
    src_idx = jax.random.randint(k2, (E,), 0, N)
    offs = jax.random.randint(k3, (E,), 1, N)
    dst_idx = (src_idx + offs) % N
    edge_index = jnp.stack([src_idx, dst_idx], axis=0)            # (2, 20)

    probs = fermi_dirac_decoder(z, edge_index, radius, r, t)
    jax.block_until_ready(probs)

    ref = _reference(z, edge_index, radius, r, t)
    assert probs.shape == (E,)
    assert jnp.allclose(probs, ref, atol=2e-5, rtol=2e-5), float(
        jnp.max(jnp.abs(probs - ref)))
    print("KERNEL_OK")
</pallas_src>

<mosaic_0001>
module attributes {stable_mosaic.version = 11 : i64} {
  func.func @_fermi_dirac_kernel(%arg0: i32, %arg1: memref<2xf32, #tpu.memory_space<smem>>, %arg2: memref<8x128xf32, #tpu.memory_space<vmem>>, %arg3: memref<8x128xf32, #tpu.memory_space<vmem>>, %arg4: memref<1x128xf32, #tpu.memory_space<vmem>>) attributes {dimension_semantics = [#tpu.dimension_semantics<parallel>], iteration_bounds = array<i64: 1>, scalar_prefetch = 0 : i64, scratch_operands = 0 : i64, tpu.core_type = #tpu.core_type<tc>, window_params = [{transform_indices = @transform_0, window_bounds = array<i64: 2>}, {transform_indices = @transform_1, window_bounds = array<i64: 8, 128>}, {transform_indices = @transform_2, window_bounds = array<i64: 8, 128>}, {transform_indices = @transform_3, window_bounds = array<i64: 1, 128>}]} {
    %c0 = arith.constant 0 : index
    %c0_0 = arith.constant 0 : index
    %0 = vector.load %arg2[%c0, %c0_0] : memref<8x128xf32, #tpu.memory_space<vmem>>, vector<8x128xf32>
    %c0_1 = arith.constant 0 : index
    %c0_2 = arith.constant 0 : index
    %1 = vector.load %arg3[%c0_1, %c0_2] : memref<8x128xf32, #tpu.memory_space<vmem>>, vector<8x128xf32>
    %2 = arith.mulf %0, %1 : vector<8x128xf32>
    %cst = arith.constant dense<0.000000e+00> : vector<128xf32>
    %3 = vector.multi_reduction <add>, %2, %cst [0] : vector<8x128xf32> to vector<128xf32>
    %4 = vector.shape_cast %3 : vector<128xf32> to vector<1x128xf32>
    %cst_3 = arith.constant 0.000000e+00 : f32
    %5 = vector.broadcast %cst_3 : f32 to vector<1x128xf32>
    %6 = arith.subf %5, %4 : vector<1x128xf32>
    %cst_4 = arith.constant 1.000000e+00 : f32
    %7 = vector.broadcast %cst_4 : f32 to vector<1x128xf32>
    %8 = arith.mulf %6, %7 : vector<1x128xf32>
    %cst_5 = arith.constant 1.000000e+00 : f32
    %9 = vector.broadcast %cst_5 : f32 to vector<1x128xf32>
    %10 = arith.subf %8, %9 : vector<1x128xf32>
    %cst_6 = arith.constant 0.000000e+00 : f32
    %11 = vector.broadcast %cst_6 : f32 to vector<1x128xf32>
    %12 = arith.maximumf %10, %11 : vector<1x128xf32>
    %cst_7 = arith.constant 2.000000e+00 : f32
    %13 = vector.broadcast %cst_7 : f32 to vector<1x128xf32>
    %14 = arith.addf %12, %13 : vector<1x128xf32>
    %15 = arith.mulf %12, %14 : vector<1x128xf32>
    %16 = math.sqrt %15 : vector<1x128xf32>
    %17 = arith.addf %12, %16 : vector<1x128xf32>
    %cst_8 = arith.constant 1.000000e+00 : f32
    %18 = vector.broadcast %cst_8 : f32 to vector<1x128xf32>
    %19 = arith.addf %18, %17 : vector<1x128xf32>
    %cst_9 = arith.constant 1.000000e+00 : f32
    %20 = vector.broadcast %cst_9 : f32 to vector<1x128xf32>
    %21 = arith.cmpf oeq, %19, %20 : vector<1x128xf32>
    %22 = math.log %19 : vector<1x128xf32>
    %cst_10 = arith.constant 1.000000e+00 : f32
    %23 = vector.broadcast %cst_10 : f32 to vector<1x128xf32>
    %24 = arith.subf %19, %23 : vector<1x128xf32>
    %cst_11 = arith.constant 1.000000e-30 : f32
    %25 = vector.broadcast %cst_11 : f32 to vector<1x128xf32>
    %26 = arith.maximumf %24, %25 : vector<1x128xf32>
    %27 = arith.divf %17, %26 : vector<1x128xf32>
    %28 = arith.mulf %22, %27 : vector<1x128xf32>
    %29 = arith.select %21, %17, %28 : vector<1x128xi1>, vector<1x128xf32>
    %c0_12 = arith.constant 0 : index
    %30 = memref.load %arg1[%c0_12] : memref<2xf32, #tpu.memory_space<smem>>
    %c1 = arith.constant 1 : index
    %31 = memref.load %arg1[%c1] : memref<2xf32, #tpu.memory_space<smem>>
    %32 = vector.broadcast %31 : f32 to vector<1x128xf32>
    %33 = arith.mulf %32, %29 : vector<1x128xf32>
    %34 = vector.broadcast %30 : f32 to vector<1x128xf32>
    %35 = arith.subf %33, %34 : vector<1x128xf32>
    %36 = math.exp %35 : vector<1x128xf32>
    %cst_13 = arith.constant 1.000000e+00 : f32
    %37 = vector.broadcast %cst_13 : f32 to vector<1x128xf32>
    %38 = arith.addf %36, %37 : vector<1x128xf32>
    %cst_14 = arith.constant 1.000000e+00 : f32
    %39 = vector.broadcast %cst_14 : f32 to vector<1x128xf32>
    %40 = arith.divf %39, %38 : vector<1x128xf32>
    %c0_15 = arith.constant 0 : index
    %c0_16 = arith.constant 0 : index
    %41 = vector.load %arg4[%c0_15, %c0_16] : memref<1x128xf32, #tpu.memory_space<vmem>>, vector<1x128xf32>
    tpu.vector_store %arg4[%c0_15, %c0_16], %40 {strides = array<i32>} : memref<1x128xf32, #tpu.memory_space<vmem>>, vector<1x128xf32>,
    return
  }
  func.func @transform_0(%arg0: i32) -> i32 {
    %c0_i32 = arith.constant 0 : i32
    %c0_i32_0 = arith.constant 0 : i32
    return %c0_i32 : i32
  }
  func.func @transform_1(%arg0: i32) -> (i32, i32) {
    %c0_i32 = arith.constant 0 : i32
    %c0_i32_0 = arith.constant 0 : i32
    return %c0_i32, %arg0 : i32, i32
  }
  func.func @transform_2(%arg0: i32) -> (i32, i32) {
    %c0_i32 = arith.constant 0 : i32
    %c0_i32_0 = arith.constant 0 : i32
    return %c0_i32, %arg0 : i32, i32
  }
  func.func @transform_3(%arg0: i32) -> (i32, i32) {
    %c0_i32 = arith.constant 0 : i32
    %c0_i32_0 = arith.constant 0 : i32
    return %c0_i32, %arg0 : i32, i32
  }
}

</mosaic_0001>

<llo_original>
// kernel: tpu_custom_call.1
$region0: #{tpu_custom_call.1}
  #allocation0 [shape = 'u32[]', space=smem, size = 0x4, offset = 0x4, fixed_abs, tag = 'smem constant byte address 0x4 - core index']
  #allocation1 [shape = 'u32[144,128]{1,0:T(1,128)}', space=vmem, size = 0x12000, scoped, tag = 'internal scratch']
  %s0 = inlined_call_operand.hbm [shape: f32[2], index: 0, kind: input, shape index: {}]
  %s1 = inlined_call_operand.hbm [shape: f32[8,128], index: 1, kind: input, shape index: {}]
  %s2 = inlined_call_operand.hbm [shape: f32[8,128], index: 2, kind: input, shape index: {}]
  %s3 = inlined_call_operand.hbm [shape: f32[1,128], index: 3, kind: output, shape index: {}]
  %s4 = sld [smem:[#allocation0]]
  $region34: #{tpu_custom_call.1} parent=0
    _
  %s6 = ssub.s32 1, %s4
  %s7 = scalar_select 0, %s6, %s4
  $region1: #{tpu_custom_call.1} parent=0
    #allocation2 [shape = 'u8[512]{0}', space=smem, size = 0x200, scoped, tag = 'input window, operand 0, single buffered']
    #allocation3 [shape = 's32[1]{0}', space=sflag, size = 0x4, scoped, tag = 'scoped memory for tpu_custom_call.1']
    #allocation4 [shape = 's32[1]{0}', space=sflag, size = 0x4, scoped, tag = 'scoped memory for tpu_custom_call.1']
    #allocation5 [shape = 's32[1]{0}', space=sflag, size = 0x4, scoped, tag = 'scoped memory for tpu_custom_call.1']
    #allocation6 [shape = 'u8[4096]{0}', space=vmem, size = 0x1000, scoped, tag = 'input window, operand 1, single buffered']
    #allocation7 [shape = 'u8[4096]{0}', space=vmem, size = 0x1000, scoped, tag = 'input window, operand 2, single buffered']
    #allocation8 [shape = 's32[1]{0}', space=sflag, size = 0x4, scoped, tag = 'scoped memory for tpu_custom_call.1']
    #allocation9 [shape = 'u8[512]{0}', space=vmem, size = 0x400, scoped, tag = 'output window, operand 0, single buffered']
    %8 = vsyncpa [#allocation5], 0
    %9 = vsyncpa [#allocation3], 0
    %10 = vsyncpa [#allocation8], 0
    %11 = vsyncpa [#allocation4], 0
    // Predicated region
    $region2: #{tpu_custom_call.1} parent=1 // pred_check
      _
    $region3: #{tpu_custom_call.1} parent=1 // pred_check_branch
      %13 = sbr.rel (0) target = $region5
    $region4: #{tpu_custom_call.1} parent=1 // pred_region
      %s15 = ssub.s32 16, 16
      %16 = vsyncadd [#allocation5], %s15
      %19 = dma.hbm_to_smem %s0, 16, [#allocation2], [#allocation5]
    $region5: #{tpu_custom_call.1} parent=1 // pred_fallthru
      _
    // Predicated region
    $region6: #{tpu_custom_call.1} parent=1 // pred_check
      _
    $region7: #{tpu_custom_call.1} parent=1 // pred_check_branch
      %21 = sbr.rel (0) target = $region9
    $region8: #{tpu_custom_call.1} parent=1 // pred_region
      %s23 = ssub.s32 128, 128
      %24 = vsyncadd [#allocation3], %s23
      %s26 = sshll.u32 [#allocation6], 4
      %s27 = int_to_ptr.vmem [resolvable:$true] %s26
      %29 = dma.hbm_to_vmem [thread:$0]  %s1, 128, %s27, [#allocation3]
    $region9: #{tpu_custom_call.1} parent=1 // pred_fallthru
      _
    // Predicated region
    $region10: #{tpu_custom_call.1} parent=1 // pred_check
      _
    $region11: #{tpu_custom_call.1} parent=1 // pred_check_branch
      %31 = sbr.rel (0) target = $region13
    $region12: #{tpu_custom_call.1} parent=1 // pred_region
      %s33 = ssub.s32 128, 128
      %34 = vsyncadd [#allocation8], %s33
      %s36 = sshll.u32 [#allocation7], 4
      %s37 = int_to_ptr.vmem [resolvable:$true] %s36
      %39 = dma.hbm_to_vmem [thread:$0]  %s2, 128, %s37, [#allocation8]
    $region13: #{tpu_custom_call.1} parent=1 // pred_fallthru
      _
    // Predicated region
    $region14: #{tpu_custom_call.1} parent=1 // pred_check
      _
    $region15: #{tpu_custom_call.1} parent=1 // pred_check_branch
      %41 = sbr.rel (0) target = $region17
    $region16: #{tpu_custom_call.1} parent=1 // pred_region
      %42 = dma.done [#allocation5], 16
    $region17: #{tpu_custom_call.1} parent=1 // pred_fallthru
      _
    // Predicated region
    $region18: #{tpu_custom_call.1} parent=1 // pred_check
      _
    $region19: #{tpu_custom_call.1} parent=1 // pred_check_branch
      %44 = sbr.rel (0) target = $region21
    $region20: #{tpu_custom_call.1} parent=1 // pred_region
      %45 = dma.done [#allocation3], 128
    $region21: #{tpu_custom_call.1} parent=1 // pred_fallthru
      _
    // Predicated region
    $region22: #{tpu_custom_call.1} parent=1 // pred_check
      _
    $region23: #{tpu_custom_call.1} parent=1 // pred_check_branch
      %47 = sbr.rel (0) target = $region25
    $region24: #{tpu_custom_call.1} parent=1 // pred_region
      %48 = dma.done [#allocation8], 128
    $region25: #{tpu_custom_call.1} parent=1 // pred_fallthru
      _
    %49 = sfence
    %v50 = vld [vmem:[#allocation6] sm:$0xff]
    %v51 = vld [vmem:[#allocation7] sm:$0xff]
    %v52 = vmul.f32 %v50, %v51
    %v53 = vrot.slane %v52, 4
    %v54 = vadd.f32 %v52, %v53
    %v55 = vrot.slane %v54, 2
    %v56 = vadd.f32 %v54, %v55
    %v57 = vrot.slane %v56, 1
    %v58 = vadd.f32 %v56, %v57
    %v59 = vsub.f32 0.0, %v58
    %v60 = vsub.f32 %v59, 1.0
    %v61 = vmax.f32 %v60, 0.0
    %v62 = vadd.f32 %v61, 2.0
    %v63 = vmul.f32 %v61, %v62
    %v64 = vrsqrt.pop %v63
    %v65 = vmul.f32 %v63, %v64
    %vm66 = vcmp.eq.f32.partialorder %v63, inf
    %v67 = vsel %vm66, %v63, %v65
    %vm68 = vcmp.eq.f32.partialorder %v63, 0.0
    %v69 = vand.u32 %v63, 2147483648
    %v70 = vsel %vm68, %v69, %v67
    %v71 = vadd.f32 %v61, %v70
    %v72 = vadd.f32 %v71, 1.0
    %vm73 = vcmp.eq.f32.partialorder %v72, 1.0
    %v74 = vlog2.pop %v72
    %v75 = vmul.f32 %v74, 0.6931472
    %v76 = vsub.f32 %v72, 1.0
    %v77 = vmax.f32 %v76, 1e-30
    %v78 = vrcp.pop %v77
    %v79 = vmul.f32 %v71, %v78
    %v80 = vmul.f32 %v75, %v79
    %v81 = vsel %vm73, %v71, %v80
    %s82 = sld [smem:[#allocation2]]
    %s83 = sld [smem:[#allocation2 + $0x1]]
    %v84 = vstv %s83
    %v85 = vmul.f32 %v84, %v81
    %v86 = vstv %s82
    %v87 = vsub.f32 %v85, %v86
    %v88 = vmul.f32 %v87, 1.442695
    %v89 = vpow.pop %v88
    %v90 = vadd.f32 %v89, 1.0
    %v91 = vrcp.pop %v90
    %v92 = vmul.f32 1.0, %v91
    %93 = vst [vmem:[#allocation9] sm:$0x1] %v92
    // Predicated region
    $region26: #{tpu_custom_call.1} parent=1 // pred_check
      _
    $region27: #{tpu_custom_call.1} parent=1 // pred_check_branch
      %95 = sbr.rel (0) target = $region29
    $region28: #{tpu_custom_call.1} parent=1 // pred_region
      %s97 = ssub.s32 16, 16
      %98 = vsyncadd [#allocation4], %s97
      %s100 = sshll.u32 [#allocation9], 4
      %s101 = int_to_ptr.vmem [resolvable:$true] %s100
      %103 = dma.vmem_to_hbm [thread:$0]  %s101, 16, %s3, [#allocation4]
    $region29: #{tpu_custom_call.1} parent=1 // pred_fallthru
      _
    // Predicated region
    $region30: #{tpu_custom_call.1} parent=1 // pred_check
      _
    $region31: #{tpu_custom_call.1} parent=1 // pred_check_branch
      %105 = sbr.rel (0) target = $region33
    $region32: #{tpu_custom_call.1} parent=1 // pred_region
      %106 = dma.done [#allocation4], 16
    $region33: #{tpu_custom_call.1} parent=1 // pred_fallthru
      _
    %107 = vsyncpa [#allocation3], 1
    %108 = vsyncpa [#allocation8], 1
    %109 = vsyncpa [#allocation4], 1
    %110 = vsyncpa [#allocation5], 1

</llo_original>
